<compile_context>
chip_gen: v7x
topology: tpu7x:2x2x1
jax: 0.10.0
libtpu: 0.0.40
codegen_flags: <defaults>
</compile_context>

<pallas_src>
import functools

import jax
import jax.numpy as jnp
import numpy as np
from jax.experimental import pallas as pl
from jax.experimental.pallas import tpu as pltpu


def _mdece_kernel(probs_ref, tgt_ref, out_ref, acc_ref, *,
                  num_bins, num_classes, hw, p_tile, t_a, t_b, ignore_class):
    img = pl.program_id(0)
    tile = pl.program_id(1)
    is_first = jnp.logical_and(img == 0, tile == 0)
    is_last = jnp.logical_and(img == pl.num_programs(0) - 1,
                              tile == pl.num_programs(1) - 1)

    @pl.when(is_first)
    def _init():
        acc_ref[...] = jnp.zeros_like(acc_ref)

    probs = probs_ref[...]                                   # (C, P) f32, pixels on lanes
    tgt = tgt_ref[...]                                       # (1, P) i32

    cls = jax.lax.broadcasted_iota(jnp.int32, (num_classes, p_tile), 0)
    if hw % p_tile:
        # last pixel tile is padded: mask invalid lanes and sanitize OOB garbage
        lane = jax.lax.broadcasted_iota(jnp.int32, (1, p_tile), 1)
        valid = (tile * p_tile + lane) < hw                  # (1, P) bool
        probs = jnp.where(valid, probs, 0.0)
        onehot = jnp.logical_and(cls == tgt, valid).astype(jnp.float32)   # (C, P)
    else:
        onehot = (cls == tgt).astype(jnp.float32)            # (C, P)

    # ---- per-pixel confidence + soft bin assignment (bins on sublanes) ----
    conf = jnp.max(probs, axis=0, keepdims=True)             # (1, P)
    j = jax.lax.broadcasted_iota(jnp.int32, (num_bins, 1), 0).astype(jnp.float32)
    w_col = j + 1.0                                          # [1 .. B]
    b_col = -j * (j + 1.0) * (0.5 / num_bins)                # cumsum(-linspace(0,1,B+1)[:-1])
    h = (conf * w_col + b_col) * (1.0 / t_b)                 # (B, P)
    h = h - jnp.max(h, axis=0, keepdims=True)
    e = jnp.exp(h)
    bin_probs = e / jnp.sum(e, axis=0, keepdims=True)        # exact div: keeps 1e-4 fidelity
    eps = 1e-6
    bin_probs = (bin_probs + eps) * (1.0 / (1.0 + (num_bins + 1) * eps))

    # ---- single-pass soft rank of the true class only ----
    #   rank_true[p] = 0.5 + sum_c sigmoid(t_a * (probs[c,p] - probs[tgt[p],p]))
    p_true = jnp.sum(onehot * probs, axis=0, keepdims=True)  # (1, P)
    rank_true = 0.5 + jnp.sum(jax.nn.sigmoid(t_a * (probs - p_true)),
                              axis=0, keepdims=True)         # (1, P)
    accs = jnp.maximum(2.0 - rank_true, 0.0)                 # (1, P)

    # ---- per-class masked sums via one MXU matmul ----
    # rows of `stack` = [bin_probs | conf*bin_probs | accs*bin_probs | ones(count)]
    stack = jnp.concatenate(
        [bin_probs, conf * bin_probs, accs * bin_probs,
         jnp.ones((1, p_tile), jnp.float32)], axis=0)        # (3B+1, P)
    partial = jax.lax.dot_general(
        onehot, stack, (((1,), (1,)), ((), ())),
        preferred_element_type=jnp.float32,
        precision=jax.lax.Precision.HIGHEST)                 # (C, 3B+1)
    acc_ref[...] += partial

    @pl.when(is_last)
    def _finalize():
        nb = num_bins
        acc = acc_ref[...]                                   # (C, 3B+1)
        s = acc[:, 0:nb]                                     # sum of bin_probs per class/bin
        sc = acc[:, nb:2 * nb]                               # sum of conf * bin_probs
        sa = acc[:, 2 * nb:3 * nb]                           # sum of accs * bin_probs
        cnt = acc[:, 3 * nb:3 * nb + 1]                      # pixels per class
        present = (cnt > 0.0).astype(jnp.float32)            # class appears in target
        denom = jnp.where(s > 0.0, s, 1.0)
        ece = jnp.sum(s * jnp.abs(sa / denom - sc / denom),
                      axis=1, keepdims=True) / jnp.maximum(cnt, 1.0)   # (C, 1)
        cidx = jax.lax.broadcasted_iota(jnp.int32, (num_classes, 1), 0)
        keep = (cidx != ignore_class).astype(jnp.float32)
        total = jnp.sum(keep * present * ece)
        n_unique = jnp.sum(present)                          # |unique(target)|, incl. ignore
        out_ref[0, 0] = total / jnp.maximum(n_unique, 1.0)


def mdece(input_nchw, target_nhw, *, num_bins=10, t_a=10.0, t_b=0.1,
          ignore_class=0, p_tile=2048):
    """JAX/Pallas equivalent of mDECE.forward for NCHW probabilities. Returns (1,) f32."""
    n, c, hgt, wid = input_nchw.shape
    hw = hgt * wid

    # class-major flatten: NCHW -> (N, C, H*W) is a free reshape (no transpose DMA).
    probs = input_nchw.reshape(n, c, hw).astype(jnp.float32)
    tgt = target_nhw.reshape(n, 1, hw).astype(jnp.int32)

    if hw <= p_tile:
        p_tile = hw                                   # one full-width tile per image
    else:
        p_tile = max(128, (p_tile // 128) * 128)      # lane dim must be 128-aligned
    num_tiles = pl.cdiv(hw, p_tile)

    kernel = functools.partial(
        _mdece_kernel, num_bins=int(num_bins), num_classes=int(c), hw=int(hw),
        p_tile=int(p_tile), t_a=float(t_a), t_b=float(t_b),
        ignore_class=int(ignore_class))

    out = pl.pallas_call(
        kernel,
        out_shape=jax.ShapeDtypeStruct((1, 1), jnp.float32),
        grid_spec=pltpu.PrefetchScalarGridSpec(
            num_scalar_prefetch=0,
            grid=(n, num_tiles),
            in_specs=[
                pl.BlockSpec((None, c, p_tile), lambda i, t: (i, 0, t)),   # probs tile (C, P)
                pl.BlockSpec((None, 1, p_tile), lambda i, t: (i, 0, t)),   # target tile (1, P)
            ],
            out_specs=pl.BlockSpec(memory_space=pltpu.MemorySpace.SMEM),   # (1, 1) scalar
            scratch_shapes=[pltpu.VMEM((c, 3 * num_bins + 1), jnp.float32)],
        ),
        compiler_params=pltpu.CompilerParams(
            # running accumulator + single scalar output => both grid axes arbitrary
            dimension_semantics=("arbitrary", "arbitrary")),
    )(probs, tgt)
    return out.reshape((1,))


# -------------------- numpy reference (mirrors the PyTorch module) --------------------
def _ref_mdece(probs, target, num_bins, t_a, t_b, ignore_class):
    def sigmoid(x):
        return 1.0 / (1.0 + np.exp(-x))

    def dece(p, t):
        nrows = p.shape[0]
        cut = np.linspace(0.0, 1.0, num_bins + 1)[:-1]
        W = np.linspace(1.0, num_bins, num_bins).reshape(1, -1)
        b = np.cumsum(-cut)
        conf = p.max(axis=1, keepdims=True)
        h = (conf @ W + b) / t_b
        h = h - h.max(axis=1, keepdims=True)
        e = np.exp(h)
        bp = e / e.sum(axis=1, keepdims=True)
        eps = 1e-6
        bp = (bp + eps) / (1.0 + (num_bins + 1) * eps)
        bin_confs = (bp.T @ conf).reshape(-1) / bp.sum(axis=0)
        diffs = p[:, :, None] - p[:, None, :]
        ind = sigmoid(t_a * np.transpose(diffs, (0, 2, 1)))
        ranks = ind.sum(axis=2) + 0.5
        true_ranks = ranks[np.arange(nrows), t]
        accs = np.maximum(2.0 - true_ranks, 0.0)
        bin_accs = (bp.T @ accs).reshape(-1) / bp.sum(axis=0)
        return np.sum(bp.sum(axis=0) * np.abs(bin_accs - bin_confs) / nrows)

    gt = np.unique(target)
    total = 0.0
    for cls in gt:
        if cls == ignore_class:
            continue
        m = target == cls
        total += dece(probs[m], target[m])
    return total / gt.shape[0]


if __name__ == "__main__":
    key = jax.random.PRNGKey(0)
    k1, k2, k3, k4 = jax.random.split(key, 4)

    NUM_BINS, T_A, T_B, IGNORE = 10, 10.0, 0.1, 0

    # case 1: small NCHW batch, single full-width tile per image
    N, C, H, W = 2, 4, 16, 16
    logits = jax.random.normal(k1, (N, C, H, W), jnp.float32)
    probs_nchw = jax.nn.softmax(logits, axis=1)
    target = jax.random.randint(k2, (N, H, W), 0, C, jnp.int32)

    out = mdece(probs_nchw, target, num_bins=NUM_BINS, t_a=T_A, t_b=T_B, ignore_class=IGNORE)
    out = jax.block_until_ready(out)

    probs_flat = np.asarray(jnp.transpose(probs_nchw, (0, 2, 3, 1)).reshape(-1, C))
    tgt_flat = np.asarray(target).reshape(-1)
    ref = _ref_mdece(probs_flat, tgt_flat, NUM_BINS, T_A, T_B, IGNORE)
    assert np.allclose(np.asarray(out)[0], ref, rtol=1e-4, atol=1e-4), (out, ref)

    # case 2: H*W not a multiple of the tile -> exercises multi-tile accumulation + lane mask
    N2, C2, H2, W2 = 1, 3, 9, 15
    logits2 = jax.random.normal(k3, (N2, C2, H2, W2), jnp.float32)
    probs2 = jax.nn.softmax(logits2, axis=1)
    target2 = jax.random.randint(k4, (N2, H2, W2), 0, C2, jnp.int32)

    out2 = mdece(probs2, target2, num_bins=NUM_BINS, t_a=T_A, t_b=T_B,
                 ignore_class=IGNORE, p_tile=128)
    out2 = jax.block_until_ready(out2)

    ref2 = _ref_mdece(np.asarray(jnp.transpose(probs2, (0, 2, 3, 1)).reshape(-1, C2)),
                      np.asarray(target2).reshape(-1), NUM_BINS, T_A, T_B, IGNORE)
    assert np.allclose(np.asarray(out2)[0], ref2, rtol=1e-4, atol=1e-4), (out2, ref2)

    print("KERNEL_OK")
</pallas_src>

<mosaic_0001>
module attributes {stable_mosaic.version = 11 : i64} {
  func.func @_mdece_kernel(%arg0: i32, %arg1: i32, %arg2: memref<1x4x256xf32, #tpu.memory_space<vmem>>, %arg3: memref<1x1x256xi32, #tpu.memory_space<vmem>>, %arg4: memref<1x1xf32, #tpu.memory_space<smem>>, %arg5: memref<4x31xf32, #tpu.memory_space<vmem>>) attributes {dimension_semantics = [#tpu.dimension_semantics<arbitrary>, #tpu.dimension_semantics<arbitrary>], iteration_bounds = array<i64: 2, 1>, scalar_prefetch = 0 : i64, scratch_operands = 1 : i64, tpu.core_type = #tpu.core_type<tc>, window_params = [{transform_indices = @transform_0, window_bounds = array<i64: 1, 4, 256>}, {transform_indices = @transform_1, window_bounds = array<i64: 1, 1, 256>}, {transform_indices = @transform_2, window_bounds = array<i64: 1, 1>}]} {
    %c0_i32 = arith.constant 0 : i32
    %0 = arith.cmpi eq, %arg0, %c0_i32 : i32
    %c0_i32_0 = arith.constant 0 : i32
    %1 = arith.cmpi eq, %arg1, %c0_i32_0 : i32
    %2 = arith.andi %0, %1 : i1
    %c1_i32 = arith.constant 1 : i32
    %3 = arith.cmpi eq, %arg0, %c1_i32 : i32
    %c0_i32_1 = arith.constant 0 : i32
    %4 = arith.cmpi eq, %arg1, %c0_i32_1 : i32
    %5 = arith.andi %3, %4 : i1
    %6 = arith.extui %2 : i1 to i32
    %c0_i32_2 = arith.constant 0 : i32
    %7 = arith.cmpi ne, %6, %c0_i32_2 : i32
    scf.if %7 {
      %cst_31 = arith.constant 0.000000e+00 : f32
      %82 = vector.broadcast %cst_31 : f32 to vector<4x31xf32>
      %c0_32 = arith.constant 0 : index
      %c0_33 = arith.constant 0 : index
      %83 = vector.load %arg5[%c0_32, %c0_33] : memref<4x31xf32, #tpu.memory_space<vmem>>, vector<4x31xf32>
      tpu.vector_store %arg5[%c0_32, %c0_33], %82 {strides = array<i32>} : memref<4x31xf32, #tpu.memory_space<vmem>>, vector<4x31xf32>,
    } else {
    }
    %c0 = arith.constant 0 : index
    %c0_3 = arith.constant 0 : index
    %c0_4 = arith.constant 0 : index
    %8 = vector.load %arg2[%c0, %c0_3, %c0_4] : memref<1x4x256xf32, #tpu.memory_space<vmem>>, vector<1x4x256xf32>
    %9 = vector.shape_cast %8 : vector<1x4x256xf32> to vector<4x256xf32>
    %c0_5 = arith.constant 0 : index
    %c0_6 = arith.constant 0 : index
    %c0_7 = arith.constant 0 : index
    %10 = vector.load %arg3[%c0_5, %c0_6, %c0_7] : memref<1x1x256xi32, #tpu.memory_space<vmem>>, vector<1x1x256xi32>
    %11 = vector.shape_cast %10 : vector<1x1x256xi32> to vector<1x256xi32>
    %12 = tpu.iota {dimensions = array<i32: 0>} : vector<4x256xi32>
    %13 = vector.broadcast %11 : vector<1x256xi32> to vector<4x256xi32>
    %14 = arith.cmpi eq, %12, %13 : vector<4x256xi32>
    %15 = arith.extui %14 : vector<4x256xi1> to vector<4x256xi32>
    %16 = arith.sitofp %15 : vector<4x256xi32> to vector<4x256xf32>
    %cst = arith.constant dense<0xFF800000> : vector<256xf32>
    %17 = vector.multi_reduction <maximumf>, %9, %cst [0] : vector<4x256xf32> to vector<256xf32>
    %18 = vector.shape_cast %17 : vector<256xf32> to vector<1x256xf32>
    %19 = tpu.iota {dimensions = array<i32: 0>} : vector<10x1xi32>
    %20 = arith.sitofp %19 : vector<10x1xi32> to vector<10x1xf32>
    %cst_8 = arith.constant 1.000000e+00 : f32
    %21 = vector.broadcast %cst_8 : f32 to vector<10x1xf32>
    %22 = arith.addf %20, %21 : vector<10x1xf32>
    %cst_9 = arith.constant 0.000000e+00 : f32
    %23 = vector.broadcast %cst_9 : f32 to vector<10x1xf32>
    %24 = arith.subf %23, %20 : vector<10x1xf32>
    %cst_10 = arith.constant 1.000000e+00 : f32
    %25 = vector.broadcast %cst_10 : f32 to vector<10x1xf32>
    %26 = arith.addf %20, %25 : vector<10x1xf32>
    %27 = arith.mulf %24, %26 : vector<10x1xf32>
    %cst_11 = arith.constant 5.000000e-02 : f32
    %28 = vector.broadcast %cst_11 : f32 to vector<10x1xf32>
    %29 = arith.mulf %27, %28 : vector<10x1xf32>
    %30 = vector.broadcast %18 : vector<1x256xf32> to vector<10x256xf32>
    %31 = vector.broadcast %22 : vector<10x1xf32> to vector<10x256xf32>
    %32 = arith.mulf %30, %31 : vector<10x256xf32>
    %33 = vector.broadcast %29 : vector<10x1xf32> to vector<10x256xf32>
    %34 = arith.addf %32, %33 : vector<10x256xf32>
    %cst_12 = arith.constant 1.000000e+01 : f32
    %35 = vector.broadcast %cst_12 : f32 to vector<10x256xf32>
    %36 = arith.mulf %34, %35 : vector<10x256xf32>
    %cst_13 = arith.constant dense<0xFF800000> : vector<256xf32>
    %37 = vector.multi_reduction <maximumf>, %36, %cst_13 [0] : vector<10x256xf32> to vector<256xf32>
    %38 = vector.shape_cast %37 : vector<256xf32> to vector<1x256xf32>
    %39 = vector.broadcast %38 : vector<1x256xf32> to vector<10x256xf32>
    %40 = arith.subf %36, %39 : vector<10x256xf32>
    %41 = math.exp %40 : vector<10x256xf32>
    %cst_14 = arith.constant dense<0.000000e+00> : vector<256xf32>
    %42 = vector.multi_reduction <add>, %41, %cst_14 [0] : vector<10x256xf32> to vector<256xf32>
    %43 = vector.shape_cast %42 : vector<256xf32> to vector<1x256xf32>
    %44 = vector.broadcast %43 : vector<1x256xf32> to vector<10x256xf32>
    %45 = arith.divf %41, %44 : vector<10x256xf32>
    %cst_15 = arith.constant 9.99999997E-7 : f32
    %46 = vector.broadcast %cst_15 : f32 to vector<10x256xf32>
    %47 = arith.addf %45, %46 : vector<10x256xf32>
    %cst_16 = arith.constant 0.999988973 : f32
    %48 = vector.broadcast %cst_16 : f32 to vector<10x256xf32>
    %49 = arith.mulf %47, %48 : vector<10x256xf32>
    %50 = arith.mulf %16, %9 : vector<4x256xf32>
    %cst_17 = arith.constant dense<0.000000e+00> : vector<256xf32>
    %51 = vector.multi_reduction <add>, %50, %cst_17 [0] : vector<4x256xf32> to vector<256xf32>
    %52 = vector.shape_cast %51 : vector<256xf32> to vector<1x256xf32>
    %53 = vector.broadcast %52 : vector<1x256xf32> to vector<4x256xf32>
    %54 = arith.subf %9, %53 : vector<4x256xf32>
    %cst_18 = arith.constant 1.000000e+01 : f32
    %55 = vector.broadcast %cst_18 : f32 to vector<4x256xf32>
    %56 = arith.mulf %55, %54 : vector<4x256xf32>
    %57 = arith.negf %56 : vector<4x256xf32>
    %58 = math.exp %57 : vector<4x256xf32>
    %cst_19 = arith.constant 1.000000e+00 : f32
    %59 = vector.broadcast %cst_19 : f32 to vector<4x256xf32>
    %60 = arith.addf %59, %58 : vector<4x256xf32>
    %61 = arith.divf %59, %60 : vector<4x256xf32>
    %cst_20 = arith.constant dense<0.000000e+00> : vector<256xf32>
    %62 = vector.multi_reduction <add>, %61, %cst_20 [0] : vector<4x256xf32> to vector<256xf32>
    %63 = vector.shape_cast %62 : vector<256xf32> to vector<1x256xf32>
    %cst_21 = arith.constant 5.000000e-01 : f32
    %64 = vector.broadcast %cst_21 : f32 to vector<1x256xf32>
    %65 = arith.addf %64, %63 : vector<1x256xf32>
    %cst_22 = arith.constant 2.000000e+00 : f32
    %66 = vector.broadcast %cst_22 : f32 to vector<1x256xf32>
    %67 = arith.subf %66, %65 : vector<1x256xf32>
    %cst_23 = arith.constant 0.000000e+00 : f32
    %68 = vector.broadcast %cst_23 : f32 to vector<1x256xf32>
    %69 = arith.maximumf %67, %68 : vector<1x256xf32>
    %70 = vector.broadcast %18 : vector<1x256xf32> to vector<10x256xf32>
    %71 = arith.mulf %70, %49 : vector<10x256xf32>
    %72 = vector.broadcast %69 : vector<1x256xf32> to vector<10x256xf32>
    %73 = arith.mulf %72, %49 : vector<10x256xf32>
    %cst_24 = arith.constant 1.000000e+00 : f32
    %74 = vector.broadcast %cst_24 : f32 to vector<1x256xf32>
    %75 = tpu.concatenate %49, %71, %73, %74 in 0 : vector<10x256xf32>, vector<10x256xf32>, vector<10x256xf32>, vector<1x256xf32> -> vector<31x256xf32>
    %cst_25 = arith.constant dense<0.000000e+00> : vector<4x31xf32>
    %76 = tpu.matmul %16, %75, %cst_25 {dimension_numbers = #tpu.dot_dimension_numbers<[1], [1], [0], [0], [0, 0, 1, 0], [], []>, precision = #tpu.contract_precision<fp32>} : vector<4x256xf32>, vector<31x256xf32>, vector<4x31xf32> -> vector<4x31xf32>
    %c0_26 = arith.constant 0 : index
    %c0_27 = arith.constant 0 : index
    %77 = vector.load %arg5[%c0_26, %c0_27] : memref<4x31xf32, #tpu.memory_space<vmem>>, vector<4x31xf32>
    %78 = arith.addf %77, %76 : vector<4x31xf32>
    %c0_28 = arith.constant 0 : index
    %c0_29 = arith.constant 0 : index
    %79 = vector.load %arg5[%c0_28, %c0_29] : memref<4x31xf32, #tpu.memory_space<vmem>>, vector<4x31xf32>
    tpu.vector_store %arg5[%c0_28, %c0_29], %78 {strides = array<i32>} : memref<4x31xf32, #tpu.memory_space<vmem>>, vector<4x31xf32>,
    %80 = arith.extui %5 : i1 to i32
    %c0_i32_30 = arith.constant 0 : i32
    %81 = arith.cmpi ne, %80, %c0_i32_30 : i32
    scf.if %81 {
      %c0_31 = arith.constant 0 : index
      %c0_32 = arith.constant 0 : index
      %82 = vector.load %arg5[%c0_31, %c0_32] : memref<4x31xf32, #tpu.memory_space<vmem>>, vector<4x31xf32>
      %83 = vector.extract_strided_slice %82 {offsets = [0, 0], sizes = [4, 10], strides = [1, 1]} : vector<4x31xf32> to vector<4x10xf32>
      %84 = vector.extract_strided_slice %82 {offsets = [0, 10], sizes = [4, 10], strides = [1, 1]} : vector<4x31xf32> to vector<4x10xf32>
      %85 = vector.extract_strided_slice %82 {offsets = [0, 20], sizes = [4, 10], strides = [1, 1]} : vector<4x31xf32> to vector<4x10xf32>
      %86 = vector.extract_strided_slice %82 {offsets = [0, 30], sizes = [4, 1], strides = [1, 1]} : vector<4x31xf32> to vector<4x1xf32>
      %cst_33 = arith.constant 0.000000e+00 : f32
      %87 = vector.broadcast %cst_33 : f32 to vector<4x1xf32>
      %88 = arith.cmpf ogt, %86, %87 : vector<4x1xf32>
      %89 = arith.extui %88 : vector<4x1xi1> to vector<4x1xi32>
      %90 = arith.sitofp %89 : vector<4x1xi32> to vector<4x1xf32>
      %cst_34 = arith.constant 0.000000e+00 : f32
      %91 = vector.broadcast %cst_34 : f32 to vector<4x10xf32>
      %92 = arith.cmpf ogt, %83, %91 : vector<4x10xf32>
      %cst_35 = arith.constant 1.000000e+00 : f32
      %93 = vector.broadcast %cst_35 : f32 to vector<4x10xf32>
      %94 = arith.select %92, %83, %93 : vector<4x10xi1>, vector<4x10xf32>
      %95 = arith.divf %85, %94 : vector<4x10xf32>
      %96 = arith.divf %84, %94 : vector<4x10xf32>
      %97 = arith.subf %95, %96 : vector<4x10xf32>
      %98 = math.absf %97 : vector<4x10xf32>
      %99 = arith.mulf %83, %98 : vector<4x10xf32>
      %cst_36 = arith.constant dense<0.000000e+00> : vector<4xf32>
      %100 = vector.multi_reduction <add>, %99, %cst_36 [1] : vector<4x10xf32> to vector<4xf32>
      %101 = vector.shape_cast %100 : vector<4xf32> to vector<4x1xf32>
      %cst_37 = arith.constant 1.000000e+00 : f32
      %102 = vector.broadcast %cst_37 : f32 to vector<4x1xf32>
      %103 = arith.maximumf %86, %102 : vector<4x1xf32>
      %104 = arith.divf %101, %103 : vector<4x1xf32>
      %105 = tpu.iota {dimensions = array<i32: 0>} : vector<4x1xi32>
      %c0_i32_38 = arith.constant 0 : i32
      %106 = vector.broadcast %c0_i32_38 : i32 to vector<4x1xi32>
      %107 = arith.cmpi ne, %105, %106 : vector<4x1xi32>
      %108 = arith.extui %107 : vector<4x1xi1> to vector<4x1xi32>
      %109 = arith.sitofp %108 : vector<4x1xi32> to vector<4x1xf32>
      %110 = arith.mulf %109, %90 : vector<4x1xf32>
      %111 = arith.mulf %110, %104 : vector<4x1xf32>
      %112 = vector.shape_cast %111 : vector<4x1xf32> to vector<1x4x1xf32>
      %cst_39 = arith.constant dense<0.000000e+00> : vector<1xf32>
      %113 = vector.multi_reduction <add>, %112, %cst_39 [1, 2] : vector<1x4x1xf32> to vector<1xf32>
      %114 = vector.shape_cast %113 : vector<1xf32> to vector<1x1x1xf32>
      %115 = vector.extract %114[0, 0, 0] : f32 from vector<1x1x1xf32>
      %116 = vector.shape_cast %90 : vector<4x1xf32> to vector<1x4x1xf32>
      %cst_40 = arith.constant dense<0.000000e+00> : vector<1xf32>
      %117 = vector.multi_reduction <add>, %116, %cst_40 [1, 2] : vector<1x4x1xf32> to vector<1xf32>
      %118 = vector.shape_cast %117 : vector<1xf32> to vector<1x1x1xf32>
      %119 = vector.extract %118[0, 0, 0] : f32 from vector<1x1x1xf32>
      %cst_41 = arith.constant 1.000000e+00 : f32
      %120 = arith.maximumf %119, %cst_41 : f32
      %121 = arith.divf %115, %120 : f32
      %c0_42 = arith.constant 0 : index
      %c0_43 = arith.constant 0 : index
      %122 = memref.load %arg4[%c0_42, %c0_43] : memref<1x1xf32, #tpu.memory_space<smem>>
      memref.store %121, %arg4[%c0_42, %c0_43] : memref<1x1xf32, #tpu.memory_space<smem>>
    } else {
    }
    return
  }
  func.func @transform_0(%arg0: i32, %arg1: i32) -> (i32, i32, i32) {
    %c0_i32 = arith.constant 0 : i32
    %c0_i32_0 = arith.constant 0 : i32
    return %arg0, %c0_i32, %arg1 : i32, i32, i32
  }
  func.func @transform_1(%arg0: i32, %arg1: i32) -> (i32, i32, i32) {
    %c0_i32 = arith.constant 0 : i32
    %c0_i32_0 = arith.constant 0 : i32
    return %arg0, %c0_i32, %arg1 : i32, i32, i32
  }
  func.func @transform_2(%arg0: i32, %arg1: i32) -> (i32, i32) {
    %c0_i32 = arith.constant 0 : i32
    %c0_i32_0 = arith.constant 0 : i32
    %c0_i32_1 = arith.constant 0 : i32
    return %c0_i32, %c0_i32_0 : i32, i32
  }
}

</mosaic_0001>

<llo_original>
// kernel: tpu_custom_call.1
$region0: #{tpu_custom_call.1}
  #allocation0 [shape = 'u32[]', space=smem, size = 0x4, offset = 0x4, fixed_abs, tag = 'smem constant byte address 0x4 - core index']
  #allocation1 [shape = 'u32[144,128]{1,0:T(1,128)}', space=vmem, size = 0x12000, scoped, tag = 'internal scratch']
  #allocation2 [shape = 'f32[4,31]{1,0:T(4,128)}', space=vmem, size = 0x800, scoped, tag = 'scratch operand']
  %s0 = inlined_call_operand.hbm [shape: f32[2,4,256], index: 0, kind: input, shape index: {}]
  %s1 = inlined_call_operand.hbm [shape: s32[2,1,256], index: 1, kind: input, shape index: {}]
  %s2 = inlined_call_operand.hbm [shape: f32[1,1], index: 2, kind: output, shape index: {}]
  %s3 = sld [smem:[#allocation0]]
  $region57: #{tpu_custom_call.1} parent=0
    _
  %s5 = ssub.s32 1, %s3
  %s6 = scalar_select 0, %s5, %s3
  $region1: #{tpu_custom_call.1} parent=0
    #allocation3 [shape = 'u8[8192]{0}', space=vmem, size = 0x2000, scoped, tag = 'input window, operand 0']
    #allocation4 [shape = 's32[2]{0}', space=sflag, size = 0x8, scoped, tag = 'scoped memory for tpu_custom_call.1']
    #allocation5 [shape = 's32[2]{0}', space=sflag, size = 0x8, scoped, tag = 'scoped memory for tpu_custom_call.1']
    #allocation6 [shape = 'u8[2048]{0}', space=vmem, size = 0x800, scoped, tag = 'input window, operand 1']
    #allocation7 [shape = 's32[2]{0}', space=sflag, size = 0x8, scoped, tag = 'scoped memory for tpu_custom_call.1']
    #allocation8 [shape = 'u8[512]{0}', space=smem, size = 0x200, scoped, tag = 'output window, operand 0, single buffered']
    %7 = vsyncpa [#allocation4], 0
    %s8 = scalar_lea.sflag [#allocation4], 1
    %9 = vsyncpa %s8, 0
    %10 = vsyncpa [#allocation7], 0
    %s11 = scalar_lea.sflag [#allocation7], 1
    %12 = vsyncpa %s11, 0
    %13 = vsyncpa [#allocation5], 0
    loop: start=0, step=1, limit=4
    $region2: #{tpu_custom_call.1} parent=1 // loop_pre_header
      _
    $region3: #{tpu_custom_call.1} parent=1 // loop_header
      %s15 = sphi 0, %s19
      %p16 = scmp.ge.s32.totalorder %s15, 4
      %s22 = sphi 0, %s34
      %s23 = sphi 0, %s30
      %s24 = sphi 0, %s22
      %s25 = sphi 0, %s23
      %s26 = sphi 0, %s24
      %s27 = sphi 0, %s25
      %s39 = sphi 0, %s41
      %s42 = sphi 0, %s39
      %s43 = sphi 0, %s42
      %s59 = sphi 0, %s43
      %s67 = sphi 0, %s69
      %s70 = sphi 0, %s67
      %s71 = sphi 0, %s70
      %s87 = sphi 0, %s71
      %s91 = sphi 0, %s91
      %s93 = sphi 0, %s91
      %s94 = sphi 0, %s93
      %s108 = sphi 0, %s94
    $region4: #{tpu_custom_call.1} parent=1 // loop_header_branch
      %18 = sbr.rel (%p16) target = $region8
    $region5: #{tpu_custom_call.1} parent=1 // loop_body
      %s20 = ssub.s32 %s15, 1
      %s21 = ssub.s32 %s15, 2
      %s28 = sadd.s32 1, %s23
      %p29 = scmp.ge.s32.totalorder %s28, 1
      %s30 = scalar_select %p29, 0, %s28
      %s31 = sadd.s32 1, %s22
      %s32 = scalar_select %p29, %s31, %s22
      %p33 = scmp.ge.s32.totalorder %s32, 2
      %s34 = scalar_select %p33, 0, %s32
      %s35 = ssub.s32 %s22, %s34
      %s36 = ssub.s32 %s23, %s30
      %s37 = sor.u32 %s35, %s36
      %p38 = scmp.eq.s32.totalorder %s37, 0
      %s40 = sadd.s32 %s39, 1
      %s41 = scalar_select %p38, %s39, %s40
      %p44 = pneg %p38
      %p45 = scmp.eq.s32.totalorder %s15, 1
      %p46 = por %p44, %p45
      %p47 = scmp.ne.s32.totalorder %s39, %s42
      %p48 = scmp.eq.s32.totalorder %s15, 0
      %p49 = por %p47, %p48
      %p50 = scmp.ne.s32.totalorder %s39, %s42
      %p51 = scmp.eq.s32.totalorder %s20, 1
      %p52 = por %p50, %p51
      %p53 = scmp.ne.s32.totalorder %s42, %s43
      %p54 = scmp.eq.s32.totalorder %s20, 0
      %p55 = por %p53, %p54
      %p56 = scmp.ne.s32.totalorder %s42, %s43
      %p57 = scmp.eq.s32.totalorder %s21, 1
      %p58 = por %p56, %p57
      %p60 = scmp.ne.s32.totalorder %s43, %s59
      %p61 = scmp.eq.s32.totalorder %s21, 0
      %p62 = por %p60, %p61
      %s63 = ssub.s32 %s22, %s34
      %s64 = ssub.s32 %s23, %s30
      %s65 = sor.u32 %s63, %s64
      %p66 = scmp.eq.s32.totalorder %s65, 0
      %s68 = sadd.s32 %s67, 1
      %s69 = scalar_select %p66, %s67, %s68
      %p72 = pneg %p66
      %p73 = scmp.eq.s32.totalorder %s15, 1
      %p74 = por %p72, %p73
      %p75 = scmp.ne.s32.totalorder %s67, %s70
      %p76 = scmp.eq.s32.totalorder %s15, 0
      %p77 = por %p75, %p76
      %p78 = scmp.ne.s32.totalorder %s67, %s70
      %p79 = scmp.eq.s32.totalorder %s20, 1
      %p80 = por %p78, %p79
      %p81 = scmp.ne.s32.totalorder %s70, %s71
      %p82 = scmp.eq.s32.totalorder %s20, 0
      %p83 = por %p81, %p82
      %p84 = scmp.ne.s32.totalorder %s70, %s71
      %p85 = scmp.eq.s32.totalorder %s21, 1
      %p86 = por %p84, %p85
      %p88 = scmp.ne.s32.totalorder %s71, %s87
      %p89 = scmp.eq.s32.totalorder %s21, 0
      %p90 = por %p88, %p89
      %s92 = sadd.s32 %s91, 1
      %p95 = scmp.eq.s32.totalorder %s15, 1
      %p96 = scmp.ne.s32.totalorder %s91, %s93
      %p97 = scmp.eq.s32.totalorder %s15, 0
      %p98 = por %p96, %p97
      %p99 = scmp.ne.s32.totalorder %s91, %s93
      %p100 = scmp.eq.s32.totalorder %s20, 1
      %p101 = por %p99, %p100
      %p102 = scmp.ne.s32.totalorder %s93, %s94
      %p103 = scmp.eq.s32.totalorder %s20, 0
      %p104 = por %p102, %p103
      %p105 = scmp.ne.s32.totalorder %s93, %s94
      %p106 = scmp.eq.s32.totalorder %s21, 1
      %p107 = por %p105, %p106
      %p109 = scmp.ne.s32.totalorder %s94, %s108
      %p110 = scmp.eq.s32.totalorder %s21, 0
      %p111 = por %p109, %p110
      %p112 = scmp.le.s32.totalorder 1, %s15
      %p113 = scmp.lt.s32.totalorder %s15, 3
      %p114 = pnand %p112, %p113
      %p115 = pneg %p114
      // Predicated region
      $region9: #{tpu_custom_call.1} parent=5 // pred_check
        _
      $region10: #{tpu_custom_call.1} parent=5 // pred_check_branch
        %117 = sbr.rel (%p114) target = $region12
      $region11: #{tpu_custom_call.1} parent=5 // pred_region
        %s118 = ssub.s32 %s15, 1
      $region12: #{tpu_custom_call.1} parent=5 // pred_fallthru
        _
      %p119 = scmp.lt.s32.totalorder %s15, 2
      // Predicated region
      $region13: #{tpu_custom_call.1} parent=5 // pred_check
        %p120 = pneg %p119
      $region14: #{tpu_custom_call.1} parent=5 // pred_check_branch
        %122 = sbr.rel (%p120) target = $region16
      $region15: #{tpu_custom_call.1} parent=5 // pred_region
        // Predicated region
        $region17: #{tpu_custom_call.1} parent=15 // pred_check
          %p123 = pneg %p49
        $region18: #{tpu_custom_call.1} parent=15 // pred_check_branch
          %125 = sbr.rel (%p123) target = $region20
        $region19: #{tpu_custom_call.1} parent=15 // pred_region
          %s126 = sand.u32 %s39, 1
          %s127 = scalar_lea.sflag [#allocation4], %s126
          %s128 = sand.u32 %s39, 1
          %s129 = smul.addr %s128, 8
          %s130 = scalar_lea.vmem [#allocation3], %s129
          %s131 = smul.u32 2, %s23
          %s133 = ssub.s32 128, 128
          %134 = vsyncadd %s127, %s133
          %s135 = smul.addr %s22, 2
          %s136 = sadd.s32 %s131, %s135
          %s137 = smul.addr %s136, 64
          %s138 = scalar_lea.hbm %s0, %s137
          %s140 = sshll.u32 %s130, 4
          %s141 = int_to_ptr.vmem [resolvable:$true] %s140
          %143 = dma.hbm_to_vmem [thread:$0]  %s138, 128, %s141, %s127
        $region20: #{tpu_custom_call.1} parent=15 // pred_fallthru
          _
        // Predicated region
        $region21: #{tpu_custom_call.1} parent=15 // pred_check
          %p144 = pneg %p77
        $region22: #{tpu_custom_call.1} parent=15 // pred_check_branch
          %146 = sbr.rel (%p144) target = $region24
        $region23: #{tpu_custom_call.1} parent=15 // pred_region
          %s147 = sand.u32 %s67, 1
          %s148 = scalar_lea.sflag [#allocation7], %s147
          %s149 = sand.u32 %s67, 1
          %s150 = smul.addr %s149, 2
          %s151 = scalar_lea.vmem [#allocation6], %s150
          %s152 = smul.u32 2, %s23
          %s154 = ssub.s32 32, 32
          %155 = vsyncadd %s148, %s154
          %s156 = smul.addr %s22, 2
          %s157 = sadd.s32 %s152, %s156
          %s158 = smul.addr %s157, 16
          %s159 = scalar_lea.hbm %s1, %s158
          %s161 = sshll.u32 %s151, 4
          %s162 = int_to_ptr.vmem [resolvable:$true] %s161
          %164 = dma.hbm_to_vmem [thread:$0]  %s159, 32, %s162, %s148
        $region24: #{tpu_custom_call.1} parent=15 // pred_fallthru
          _
      $region16: #{tpu_custom_call.1} parent=5 // pred_fallthru
        _
      %p165 = scmp.le.s32.totalorder 1, %s15
      %p166 = scmp.lt.s32.totalorder %s15, 3
      %p167 = pnand %p165, %p166
      %p168 = pneg %p167
      // Predicated region
      $region25: #{tpu_custom_call.1} parent=5 // pred_check
        _
      $region26: #{tpu_custom_call.1} parent=5 // pred_check_branch
        %170 = sbr.rel (%p167) target = $region28
      $region27: #{tpu_custom_call.1} parent=5 // pred_region
        %s171 = ssub.s32 %s15, 1
        %s172 = sand.u32 %s42, 1
        %s173 = scalar_lea.sflag [#allocation4], %s172
        %s174 = sand.u32 %s42, 1
        %s175 = smul.addr %s174, 8
        %s176 = scalar_lea.vmem [#allocation3], %s175
        // Predicated region
        $region29: #{tpu_custom_call.1} parent=27 // pred_check
          %p177 = pneg %p55
        $region30: #{tpu_custom_call.1} parent=27 // pred_check_branch
          %179 = sbr.rel (%p177) target = $region32
        $region31: #{tpu_custom_call.1} parent=27 // pred_region
          %180 = dma.done %s173, 128
        $region32: #{tpu_custom_call.1} parent=27 // pred_fallthru
          _
        %s181 = sand.u32 %s70, 1
        %s182 = scalar_lea.sflag [#allocation7], %s181
        %s183 = sand.u32 %s70, 1
        %s184 = smul.addr %s183, 2
        %s185 = scalar_lea.vmem [#allocation6], %s184
        // Predicated region
        $region33: #{tpu_custom_call.1} parent=27 // pred_check
          %p186 = pneg %p83
        $region34: #{tpu_custom_call.1} parent=27 // pred_check_branch
          %188 = sbr.rel (%p186) target = $region36
        $region35: #{tpu_custom_call.1} parent=27 // pred_region
          %189 = dma.done %s182, 32
        $region36: #{tpu_custom_call.1} parent=27 // pred_fallthru
          _
        %s190 = sand.u32 %s42, 1
        %s191 = scalar_lea.sflag [#allocation4], %s190
        %s192 = sand.u32 %s42, 1
        %s193 = smul.addr %s192, 8
        %s194 = scalar_lea.vmem [#allocation3], %s193
        %p195 = pneg %p55
        %p196 = pneg %p52
        %s197 = sand.u32 %s70, 1
        %s198 = scalar_lea.sflag [#allocation7], %s197
        %s199 = sand.u32 %s70, 1
        %s200 = smul.addr %s199, 2
        %s201 = scalar_lea.vmem [#allocation6], %s200
        %p202 = pneg %p83
        %p203 = pneg %p80
        %p204 = pneg %p104
        %p205 = pneg %p101
        %s206 = smul.u32 2, %s25
        %s207 = smul.u32 2, %s25
        %p208 = scmp.eq.s32.totalorder %s24, 0
        %p209 = scmp.eq.s32.totalorder %s25, 0
        %p210 = pnand %p208, %p209
        %p211 = pneg %p210
        %p212 = scmp.eq.s32.totalorder %s24, 1
        %p213 = pnand %p212, %p209
        %p214 = pneg %p213
        // Predicated region
        $region37: #{tpu_custom_call.1} parent=27 // pred_check
          _
        $region38: #{tpu_custom_call.1} parent=27 // pred_check_branch
          %216 = sbr.rel (%p210) target = $region40
        $region39: #{tpu_custom_call.1} parent=27 // pred_region
          %vm217 = vcmask 248832
          %218 = vst.msk [vmem:[#allocation2] sm:$0xf] %vm217, 0.0
        $region40: #{tpu_custom_call.1} parent=27 // pred_fallthru
          _
        %v219 = vld [vmem:[%s176] sm:$0xff]
        %v220 = vld [vmem:[%s185] sm:$0x3]
        %v221 = vlaneseq
        %v222 = vshrl.u32 %v221, 7
        %v223 = vlaneseq
        %v224 = vshrl.u32 %v223, 7
        %v225 = vsub.s32 0, %v224
        %v226 = vrot.slane %v220, %v225
        %v227 = vlaneseq
        %v228 = vshrl.u32 %v227, 7
        %v229 = vsub.s32 1, %v228
        %v230 = vrot.slane %v220, %v229
        %vm231 = vcmp.eq.s32.totalorder %v222, %v226
        %vm232 = vcmp.eq.s32.totalorder %v222, %v230
        %v233 = vsel %vm231, 1, 0
        %v234 = vsel %vm232, 1, 0
        %v235 = vcvt.s32.f32 %v233
        %v236 = vcvt.s32.f32 %v234
        %v238 = vcombine.high %v219, %v219
        %vm240 = vcmask 1043456
        %v241 = vsel %vm240, %v219, -inf
        %v242 = vrot.slane %v241, 4
        %v243 = vmax.f32 %v241, %v242
        %v244 = vrot.slane %v243, 2
        %v245 = vmax.f32 %v243, %v244
        %v246 = vrot.slane %v245, 1
        %v247 = vmax.f32 %v245, %v246
        %v248 = vsel %vm240, %v238, -inf
        %v249 = vrot.slane %v248, 4
        %v250 = vmax.f32 %v248, %v249
        %v251 = vrot.slane %v250, 2
        %v252 = vmax.f32 %v250, %v251
        %v253 = vrot.slane %v252, 1
        %v254 = vmax.f32 %v252, %v253
        %v255 = vadd.s32 %v222, 8
        %v256 = vcvt.s32.f32 %v222
        %v257 = vcvt.s32.f32 %v255
        %v258 = vadd.f32 %v256, 1.0
        %v259 = vadd.f32 %v257, 1.0
        %v260 = vsub.f32 0.0, %v256
        %v261 = vsub.f32 0.0, %v257
        %v262 = vmul.f32 %v260, %v258
        %v263 = vmul.f32 %v261, %v259
        %v264 = vmul.f32 %v262, 0.05
        %v265 = vmul.f32 %v263, 0.05
        %v266 = vmul.f32 %v247, %v258
        %v267 = vmul.f32 %v254, %v258
        %v268 = vmul.f32 %v247, %v259
        %v269 = vmul.f32 %v254, %v259
        %v270 = vadd.f32 %v266, %v264
        %v271 = vadd.f32 %v267, %v264
        %v272 = vadd.f32 %v268, %v265
        %v273 = vadd.f32 %v269, %v265
        %v274 = vmul.f32 %v270, 10.0
        %v275 = vmul.f32 %v271, 10.0
        %v276 = vmul.f32 %v272, 10.0
        %v277 = vmul.f32 %v273, 10.0
        %vm278 = vcmask 1041408
        %v279 = vsel %vm278, %v276, -inf
        %v280 = vmax.f32 %v274, %v279
        %v281 = vrot.slane %v280, 4
        %v282 = vmax.f32 %v280, %v281
        %v283 = vrot.slane %v282, 2
        %v284 = vmax.f32 %v282, %v283
        %v285 = vrot.slane %v284, 1
        %v286 = vmax.f32 %v284, %v285
        %v287 = vsel %vm278, %v277, -inf
        %v288 = vmax.f32 %v275, %v287
        %v289 = vrot.slane %v288, 4
        %v290 = vmax.f32 %v288, %v289
        %v291 = vrot.slane %v290, 2
        %v292 = vmax.f32 %v290, %v291
        %v293 = vrot.slane %v292, 1
        %v294 = vmax.f32 %v292, %v293
        %v295 = vsub.f32 %v274, %v286
        %v296 = vsub.f32 %v275, %v294
        %v297 = vsub.f32 %v276, %v286
        %v298 = vsub.f32 %v277, %v294
        %v299 = vmul.f32 %v295, 1.442695
        %v300 = vpow.pop %v299
        %v301 = vmul.f32 %v296, 1.442695
        %v302 = vpow.pop %v301
        %v303 = vmul.f32 %v297, 1.442695
        %v304 = vpow.pop %v303
        %v305 = vmul.f32 %v298, 1.442695
        %v306 = vpow.pop %v305
        %v307 = vsel %vm278, %v304, 0.0
        %v308 = vadd.f32 %v300, %v307
        %v309 = vrot.slane %v308, 4
        %v310 = vadd.f32 %v308, %v309
        %v311 = vrot.slane %v310, 2
        %v312 = vadd.f32 %v310, %v311
        %v313 = vrot.slane %v312, 1
        %v314 = vadd.f32 %v312, %v313
        %v315 = vsel %vm278, %v306, 0.0
        %v316 = vadd.f32 %v302, %v315
        %v317 = vrot.slane %v316, 4
        %v318 = vadd.f32 %v316, %v317
        %v319 = vrot.slane %v318, 2
        %v320 = vadd.f32 %v318, %v319
        %v321 = vrot.slane %v320, 1
        %v322 = vadd.f32 %v320, %v321
        %v323 = vrcp.pop %v314
        %v324 = vmul.f32 %v300, %v323
        %v325 = vrcp.pop %v322
        %v326 = vmul.f32 %v302, %v325
        %v327 = vmul.f32 %v304, %v323
        %v328 = vmul.f32 %v306, %v325
        %v329 = vadd.f32 %v324, 1e-06
        %v330 = vadd.f32 %v326, 1e-06
        %v331 = vadd.f32 %v327, 1e-06
        %v332 = vadd.f32 %v328, 1e-06
        %v333 = vmul.f32 %v329, 0.999989
        %v334 = vmul.f32 %v330, 0.999989
        %v335 = vmul.f32 %v331, 0.999989
        %v336 = vmul.f32 %v332, 0.999989
        %v337 = vmul.f32 %v235, %v219
        %v338 = vmul.f32 %v236, %v238
        %v339 = vsel %vm240, %v337, 0.0
        %v340 = vrot.slane %v339, 4
        %v341 = vadd.f32 %v339, %v340
        %v342 = vrot.slane %v341, 2
        %v343 = vadd.f32 %v341, %v342
        %v344 = vrot.slane %v343, 1
        %v345 = vadd.f32 %v343, %v344
        %v346 = vsel %vm240, %v338, 0.0
        %v347 = vrot.slane %v346, 4
        %v348 = vadd.f32 %v346, %v347
        %v349 = vrot.slane %v348, 2
        %v350 = vadd.f32 %v348, %v349
        %v351 = vrot.slane %v350, 1
        %v352 = vadd.f32 %v350, %v351
        %v355 = vcombine.low %v345, %v352
        %v357 = vsub.f32 %v219, %v355
        %v358 = vmul.f32 %v357, 10.0
        %v359 = vxor.u32 %v358, 2147483648
        %v360 = vmul.f32 %v359, 1.442695
        %v361 = vpow.pop %v360
        %v362 = vadd.f32 %v361, 1.0
        %v363 = vrcp.pop %v362
        %v364 = vmul.f32 1.0, %v363
        %v366 = vcombine.high %v364, %v364
        %v368 = vsel %vm240, %v364, 0.0
        %v369 = vrot.slane %v368, 4
        %v370 = vadd.f32 %v368, %v369
        %v371 = vrot.slane %v370, 2
        %v372 = vadd.f32 %v370, %v371
        %v373 = vrot.slane %v372, 1
        %v374 = vadd.f32 %v372, %v373
        %v375 = vsel %vm240, %v366, 0.0
        %v376 = vrot.slane %v375, 4
        %v377 = vadd.f32 %v375, %v376
        %v378 = vrot.slane %v377, 2
        %v379 = vadd.f32 %v377, %v378
        %v380 = vrot.slane %v379, 1
        %v381 = vadd.f32 %v379, %v380
        %v382 = vadd.f32 %v374, 0.5
        %v383 = vadd.f32 %v381, 0.5
        %v384 = vsub.f32 2.0, %v382
        %v385 = vsub.f32 2.0, %v383
        %v386 = vmax.f32 %v384, 0.0
        %v387 = vmax.f32 %v385, 0.0
        %v388 = vmul.f32 %v247, %v333
        %v389 = vmul.f32 %v254, %v334
        %v390 = vmul.f32 %v247, %v335
        %v391 = vmul.f32 %v254, %v336
        %v392 = vmul.f32 %v386, %v333
        %v393 = vmul.f32 %v387, %v334
        %v394 = vmul.f32 %v386, %v335
        %v395 = vmul.f32 %v387, %v336
        %v400 = vrot.slane %v388, 6
        %v401 = vrot.slane %v389, 6
        %v402 = vrot.slane %v390, 6
        %v403 = vsel %vm278, %v400, %v402
        %v404 = vrot.slane %v391, 6
        %v405 = vsel %vm278, %v401, %v404
        %v414 = vrot.slane %v392, 4
        %v415 = vrot.slane %v393, 4
        %v416 = vrot.slane %v394, 4
        %v417 = vsel %vm240, %v414, %v416
        %v418 = vrot.slane %v395, 4
        %v419 = vsel %vm240, %v415, %v418
        %v424 = vsel %vm278, %v335, %v400
        %v425 = vsel %vm278, %v336, %v401
        %v426 = vsel %vm240, %v403, %v414
        %v427 = vsel %vm240, %v405, %v415
        %vm428 = vcmask 1045504
        %v429 = vsel %vm428, %v417, 1.0
        %v430 = vsel %vm428, %v419, 1.0
        %v431 = vand.u32 %v334, 4294901760
        %432 = vmatprep.subr.mxu0 %v431
        %v433 = vand.u32 %v333, 4294901760
        %434 = vmatpush1.xpose.msra.mxu0 %v433
        %v435 = vand.u32 %v425, 4294901760
        %436 = vmatprep.subr.mxu0 %v435
        %v437 = vand.u32 %v424, 4294901760
        %438 = vmatpush1.xpose.msra.mxu0 %v437
        %v439 = vand.u32 %v427, 4294901760
        %440 = vmatprep.subr.mxu0 %v439
        %v441 = vand.u32 %v426, 4294901760
        %442 = vmatpush1.xpose.msra.mxu0 %v441
        %v443 = vand.u32 %v430, 4294901760
        %444 = vmatprep.subr.mxu0 %v443
        %v445 = vand.u32 %v429, 4294901760
        %446 = vmatpush1.xpose.msra.mxu0 %v445
        %447 = vmatprep.subr.mxu0 0.0
        %448 = vmatpush1.xpose.msra.mxu0 0.0
        %449 = vmatprep.subr.mxu0 0.0
        %450 = vmatpush1.xpose.msra.mxu0 0.0
        %451 = vmatprep.subr.mxu0 0.0
        %452 = vmatpush1.xpose.msra.mxu0 0.0
        %453 = vmatprep.subr.mxu0 0.0
        %454 = vmatpush1.xpose.msra.mxu0 0.0
        %455 = vmatprep.subr.mxu0 0.0
        %456 = vmatpush1.xpose.msra.mxu0 0.0
        %457 = vmatprep.subr.mxu0 0.0
        %458 = vmatpush1.xpose.msra.mxu0 0.0
        %459 = vmatprep.subr.mxu0 0.0
        %460 = vmatpush1.xpose.msra.mxu0 0.0
        %461 = vmatprep.subr.mxu0 0.0
        %462 = vmatpush1.xpose.msra.mxu0 0.0
        %463 = vmatprep.subr.mxu0 0.0
        %464 = vmatpush1.xpose.msra.mxu0 0.0
        %465 = vmatprep.subr.mxu0 0.0
        %466 = vmatpush1.xpose.msra.mxu0 0.0
        %467 = vmatprep.subr.mxu0 0.0
        %468 = vmatpush1.xpose.msra.mxu0 0.0
        %469 = vmatprep.subr.mxu0 0.0
        %470 = vmatpush1.xpose.msra.mxu0 0.0
        %471 = vmatprep.subr.mxu0 0.0
        %472 = vmatpush1.xpose.msra.mxu0 0.0
        %473 = vmatprep.subr.mxu0 0.0
        %474 = vmatpush1.xpose.msra.mxu0 0.0
        %475 = vmatprep.subr.mxu0 0.0
        %476 = vmatpush1.xpose.msra.mxu0 0.0
        %477 = vmatprep.subr.mxu0 0.0
        %478 = vmatpush1.xpose.msra.mxu0 0.0
        %479 = vmatprep.subr.mxu0 0.0
        %480 = vmatpush1.xpose.msra.mxu0 0.0
        %481 = vmatprep.subr.mxu0 0.0
        %482 = vmatpush1.xpose.msra.mxu0 0.0
        %483 = vmatprep.subr.mxu0 0.0
        %484 = vmatpush1.xpose.msra.mxu0 0.0
        %485 = vmatprep.subr.mxu0 0.0
        %486 = vmatpush1.xpose.msra.mxu0 0.0
        %487 = vmatprep.subr.mxu0 0.0
        %488 = vmatpush1.xpose.msra.mxu0 0.0
        %489 = vmatprep.subr.mxu0 0.0
        %490 = vmatpush1.xpose.msra.mxu0 0.0
        %491 = vmatprep.subr.mxu0 0.0
        %492 = vmatpush1.xpose.msra.mxu0 0.0
        %493 = vmatprep.subr.mxu0 0.0
        %494 = vmatpush1.xpose.msra.mxu0 0.0
        %495 = vmatprep.subr.mxu0 0.0
        %496 = vmatpush1.xpose.msra.mxu0 0.0
        %497 = vmatprep.subr.mxu0 0.0
        %498 = vmatpush1.xpose.msra.mxu0 0.0
        %499 = vmatprep.subr.mxu0 0.0
        %500 = vmatpush1.xpose.msra.mxu0 0.0
        %501 = vmatprep.subr.mxu0 0.0
        %502 = vmatpush1.xpose.msra.mxu0 0.0
        %v503 = vand.u32 %v236, 4294901760
        %v504 = vsub.f32 %v236, %v503
        %v505 = vand.u32 %v504, 4294901760
        %v506 = vsub.f32 %v504, %v505
        %v507 = vand.u32 %v506, 4294901760
        %508 = vmatprep.mubr.f32.mxu0 %v507
        %v509 = vand.u32 %v235, 4294901760
        %v510 = vsub.f32 %v235, %v509
        %v511 = vand.u32 %v510, 4294901760
        %v512 = vsub.f32 %v510, %v511
        %v513 = vand.u32 %v512, 4294901760
        %514 = vmatmul.mubr.f32.gmra.mrb[0].mxu0 %v513
        %v515 = vpop.f32.mrb[0].mxu0
        %v516 = vadd.f32 0.0, %v515
        %v517 = vpop.f32.mrb[0].mxu0
        %518 = vdwg.mxu0
        %v519 = vand.u32 %v334, 4294901760
        %v520 = vsub.f32 %v334, %v519
        %v521 = vand.u32 %v520, 4294901760
        %v522 = vsub.f32 %v520, %v521
        %v523 = vand.u32 %v522, 4294901760
        %524 = vmatprep.subr.mxu0 %v523
        %v525 = vand.u32 %v333, 4294901760
        %v526 = vsub.f32 %v333, %v525
        %v527 = vand.u32 %v526, 4294901760
        %v528 = vsub.f32 %v526, %v527
        %v529 = vand.u32 %v528, 4294901760
        %530 = vmatpush1.xpose.msra.mxu0 %v529
        %v531 = vand.u32 %v425, 4294901760
        %v532 = vsub.f32 %v425, %v531
        %v533 = vand.u32 %v532, 4294901760
        %v534 = vsub.f32 %v532, %v533
        %v535 = vand.u32 %v534, 4294901760
        %536 = vmatprep.subr.mxu0 %v535
        %v537 = vand.u32 %v424, 4294901760
        %v538 = vsub.f32 %v424, %v537
        %v539 = vand.u32 %v538, 4294901760
        %v540 = vsub.f32 %v538, %v539
        %v541 = vand.u32 %v540, 4294901760
        %542 = vmatpush1.xpose.msra.mxu0 %v541
        %v543 = vand.u32 %v427, 4294901760
        %v544 = vsub.f32 %v427, %v543
        %v545 = vand.u32 %v544, 4294901760
        %v546 = vsub.f32 %v544, %v545
        %v547 = vand.u32 %v546, 4294901760
        %548 = vmatprep.subr.mxu0 %v547
        %v549 = vand.u32 %v426, 4294901760
        %v550 = vsub.f32 %v426, %v549
        %v551 = vand.u32 %v550, 4294901760
        %v552 = vsub.f32 %v550, %v551
        %v553 = vand.u32 %v552, 4294901760
        %554 = vmatpush1.xpose.msra.mxu0 %v553
        %v555 = vand.u32 %v430, 4294901760
        %v556 = vsub.f32 %v430, %v555
        %v557 = vand.u32 %v556, 4294901760
        %v558 = vsub.f32 %v556, %v557
        %v559 = vand.u32 %v558, 4294901760
        %560 = vmatprep.subr.mxu0 %v559
        %v561 = vand.u32 %v429, 4294901760
        %v562 = vsub.f32 %v429, %v561
        %v563 = vand.u32 %v562, 4294901760
        %v564 = vsub.f32 %v562, %v563
        %v565 = vand.u32 %v564, 4294901760
        %566 = vmatpush1.xpose.msra.mxu0 %v565
        %567 = vmatprep.subr.mxu0 0.0
        %568 = vmatpush1.xpose.msra.mxu0 0.0
        %569 = vmatprep.subr.mxu0 0.0
        %570 = vmatpush1.xpose.msra.mxu0 0.0
        %571 = vmatprep.subr.mxu0 0.0
        %572 = vmatpush1.xpose.msra.mxu0 0.0
        %573 = vmatprep.subr.mxu0 0.0
        %574 = vmatpush1.xpose.msra.mxu0 0.0
        %575 = vmatprep.subr.mxu0 0.0
        %576 = vmatpush1.xpose.msra.mxu0 0.0
        %577 = vmatprep.subr.mxu0 0.0
        %578 = vmatpush1.xpose.msra.mxu0 0.0
        %579 = vmatprep.subr.mxu0 0.0
        %580 = vmatpush1.xpose.msra.mxu0 0.0
        %581 = vmatprep.subr.mxu0 0.0
        %582 = vmatpush1.xpose.msra.mxu0 0.0
        %583 = vmatprep.subr.mxu0 0.0
        %584 = vmatpush1.xpose.msra.mxu0 0.0
        %585 = vmatprep.subr.mxu0 0.0
        %586 = vmatpush1.xpose.msra.mxu0 0.0
        %587 = vmatprep.subr.mxu0 0.0
        %588 = vmatpush1.xpose.msra.mxu0 0.0
        %589 = vmatprep.subr.mxu0 0.0
        %590 = vmatpush1.xpose.msra.mxu0 0.0
        %591 = vmatprep.subr.mxu0 0.0
        %592 = vmatpush1.xpose.msra.mxu0 0.0
        %593 = vmatprep.subr.mxu0 0.0
        %594 = vmatpush1.xpose.msra.mxu0 0.0
        %595 = vmatprep.subr.mxu0 0.0
        %596 = vmatpush1.xpose.msra.mxu0 0.0
        %597 = vmatprep.subr.mxu0 0.0
        %598 = vmatpush1.xpose.msra.mxu0 0.0
        %599 = vmatprep.subr.mxu0 0.0
        %600 = vmatpush1.xpose.msra.mxu0 0.0
        %601 = vmatprep.subr.mxu0 0.0
        %602 = vmatpush1.xpose.msra.mxu0 0.0
        %603 = vmatprep.subr.mxu0 0.0
        %604 = vmatpush1.xpose.msra.mxu0 0.0
        %605 = vmatprep.subr.mxu0 0.0
        %606 = vmatpush1.xpose.msra.mxu0 0.0
        %607 = vmatprep.subr.mxu0 0.0
        %608 = vmatpush1.xpose.msra.mxu0 0.0
        %609 = vmatprep.subr.mxu0 0.0
        %610 = vmatpush1.xpose.msra.mxu0 0.0
        %611 = vmatprep.subr.mxu0 0.0
        %612 = vmatpush1.xpose.msra.mxu0 0.0
        %613 = vmatprep.subr.mxu0 0.0
        %614 = vmatpush1.xpose.msra.mxu0 0.0
        %615 = vmatprep.subr.mxu0 0.0
        %616 = vmatpush1.xpose.msra.mxu0 0.0
        %617 = vmatprep.subr.mxu0 0.0
        %618 = vmatpush1.xpose.msra.mxu0 0.0
        %619 = vmatprep.subr.mxu0 0.0
        %620 = vmatpush1.xpose.msra.mxu0 0.0
        %621 = vmatprep.subr.mxu0 0.0
        %622 = vmatpush1.xpose.msra.mxu0 0.0
        %v623 = vand.u32 %v236, 4294901760
        %624 = vmatprep.mubr.f32.mxu0 %v623
        %v625 = vand.u32 %v235, 4294901760
        %626 = vmatmul.mubr.f32.gmra.mrb[0].mxu0 %v625
        %v627 = vpop.f32.mrb[0].mxu0
        %v628 = vadd.f32 %v516, %v627
        %v629 = vpop.f32.mrb[0].mxu0
        %630 = vdwg.mxu0
        %v631 = vand.u32 %v334, 4294901760
        %v632 = vsub.f32 %v334, %v631
        %633 = vmatprep.subr.mxu0 %v632
        %v634 = vand.u32 %v333, 4294901760
        %v635 = vsub.f32 %v333, %v634
        %636 = vmatpush1.xpose.msra.mxu0 %v635
        %v637 = vand.u32 %v425, 4294901760
        %v638 = vsub.f32 %v425, %v637
        %639 = vmatprep.subr.mxu0 %v638
        %v640 = vand.u32 %v424, 4294901760
        %v641 = vsub.f32 %v424, %v640
        %642 = vmatpush1.xpose.msra.mxu0 %v641
        %v643 = vand.u32 %v427, 4294901760
        %v644 = vsub.f32 %v427, %v643
        %645 = vmatprep.subr.mxu0 %v644
        %v646 = vand.u32 %v426, 4294901760
        %v647 = vsub.f32 %v426, %v646
        %648 = vmatpush1.xpose.msra.mxu0 %v647
        %v649 = vand.u32 %v430, 4294901760
        %v650 = vsub.f32 %v430, %v649
        %651 = vmatprep.subr.mxu0 %v650
        %v652 = vand.u32 %v429, 4294901760
        %v653 = vsub.f32 %v429, %v652
        %654 = vmatpush1.xpose.msra.mxu0 %v653
        %655 = vmatprep.subr.mxu0 0.0
        %656 = vmatpush1.xpose.msra.mxu0 0.0
        %657 = vmatprep.subr.mxu0 0.0
        %658 = vmatpush1.xpose.msra.mxu0 0.0
        %659 = vmatprep.subr.mxu0 0.0
        %660 = vmatpush1.xpose.msra.mxu0 0.0
        %661 = vmatprep.subr.mxu0 0.0
        %662 = vmatpush1.xpose.msra.mxu0 0.0
        %663 = vmatprep.subr.mxu0 0.0
        %664 = vmatpush1.xpose.msra.mxu0 0.0
        %665 = vmatprep.subr.mxu0 0.0
        %666 = vmatpush1.xpose.msra.mxu0 0.0
        %667 = vmatprep.subr.mxu0 0.0
        %668 = vmatpush1.xpose.msra.mxu0 0.0
        %669 = vmatprep.subr.mxu0 0.0
        %670 = vmatpush1.xpose.msra.mxu0 0.0
        %671 = vmatprep.subr.mxu0 0.0
        %672 = vmatpush1.xpose.msra.mxu0 0.0
        %673 = vmatprep.subr.mxu0 0.0
        %674 = vmatpush1.xpose.msra.mxu0 0.0
        %675 = vmatprep.subr.mxu0 0.0
        %676 = vmatpush1.xpose.msra.mxu0 0.0
        %677 = vmatprep.subr.mxu0 0.0
        %678 = vmatpush1.xpose.msra.mxu0 0.0
        %679 = vmatprep.subr.mxu0 0.0
        %680 = vmatpush1.xpose.msra.mxu0 0.0
        %681 = vmatprep.subr.mxu0 0.0
        %682 = vmatpush1.xpose.msra.mxu0 0.0
        %683 = vmatprep.subr.mxu0 0.0
        %684 = vmatpush1.xpose.msra.mxu0 0.0
        %685 = vmatprep.subr.mxu0 0.0
        %686 = vmatpush1.xpose.msra.mxu0 0.0
        %687 = vmatprep.subr.mxu0 0.0
        %688 = vmatpush1.xpose.msra.mxu0 0.0
        %689 = vmatprep.subr.mxu0 0.0
        %690 = vmatpush1.xpose.msra.mxu0 0.0
        %691 = vmatprep.subr.mxu0 0.0
        %692 = vmatpush1.xpose.msra.mxu0 0.0
        %693 = vmatprep.subr.mxu0 0.0
        %694 = vmatpush1.xpose.msra.mxu0 0.0
        %695 = vmatprep.subr.mxu0 0.0
        %696 = vmatpush1.xpose.msra.mxu0 0.0
        %697 = vmatprep.subr.mxu0 0.0
        %698 = vmatpush1.xpose.msra.mxu0 0.0
        %699 = vmatprep.subr.mxu0 0.0
        %700 = vmatpush1.xpose.msra.mxu0 0.0
        %701 = vmatprep.subr.mxu0 0.0
        %702 = vmatpush1.xpose.msra.mxu0 0.0
        %703 = vmatprep.subr.mxu0 0.0
        %704 = vmatpush1.xpose.msra.mxu0 0.0
        %705 = vmatprep.subr.mxu0 0.0
        %706 = vmatpush1.xpose.msra.mxu0 0.0
        %707 = vmatprep.subr.mxu0 0.0
        %708 = vmatpush1.xpose.msra.mxu0 0.0
        %709 = vmatprep.subr.mxu0 0.0
        %710 = vmatpush1.xpose.msra.mxu0 0.0
        %v711 = vand.u32 %v236, 4294901760
        %v712 = vsub.f32 %v236, %v711
        %713 = vmatprep.mubr.f32.mxu0 %v712
        %v714 = vand.u32 %v235, 4294901760
        %v715 = vsub.f32 %v235, %v714
        %716 = vmatmul.mubr.f32.gmra.mrb[0].mxu0 %v715
        %v717 = vpop.f32.mrb[0].mxu0
        %v718 = vadd.f32 %v628, %v717
        %v719 = vpop.f32.mrb[0].mxu0
        %720 = vdwg.mxu0
        %v721 = vand.u32 %v334, 4294901760
        %722 = vmatprep.subr.mxu0 %v721
        %v723 = vand.u32 %v333, 4294901760
        %724 = vmatpush1.xpose.msra.mxu0 %v723
        %v725 = vand.u32 %v425, 4294901760
        %726 = vmatprep.subr.mxu0 %v725
        %v727 = vand.u32 %v424, 4294901760
        %728 = vmatpush1.xpose.msra.mxu0 %v727
        %v729 = vand.u32 %v427, 4294901760
        %730 = vmatprep.subr.mxu0 %v729
        %v731 = vand.u32 %v426, 4294901760
        %732 = vmatpush1.xpose.msra.mxu0 %v731
        %v733 = vand.u32 %v430, 4294901760
        %734 = vmatprep.subr.mxu0 %v733
        %v735 = vand.u32 %v429, 4294901760
        %736 = vmatpush1.xpose.msra.mxu0 %v735
        %737 = vmatprep.subr.mxu0 0.0
        %738 = vmatpush1.xpose.msra.mxu0 0.0
        %739 = vmatprep.subr.mxu0 0.0
        %740 = vmatpush1.xpose.msra.mxu0 0.0
        %741 = vmatprep.subr.mxu0 0.0
        %742 = vmatpush1.xpose.msra.mxu0 0.0
        %743 = vmatprep.subr.mxu0 0.0
        %744 = vmatpush1.xpose.msra.mxu0 0.0
        %745 = vmatprep.subr.mxu0 0.0
        %746 = vmatpush1.xpose.msra.mxu0 0.0
        %747 = vmatprep.subr.mxu0 0.0
        %748 = vmatpush1.xpose.msra.mxu0 0.0
        %749 = vmatprep.subr.mxu0 0.0
        %750 = vmatpush1.xpose.msra.mxu0 0.0
        %751 = vmatprep.subr.mxu0 0.0
        %752 = vmatpush1.xpose.msra.mxu0 0.0
        %753 = vmatprep.subr.mxu0 0.0
        %754 = vmatpush1.xpose.msra.mxu0 0.0
        %755 = vmatprep.subr.mxu0 0.0
        %756 = vmatpush1.xpose.msra.mxu0 0.0
        %757 = vmatprep.subr.mxu0 0.0
        %758 = vmatpush1.xpose.msra.mxu0 0.0
        %759 = vmatprep.subr.mxu0 0.0
        %760 = vmatpush1.xpose.msra.mxu0 0.0
        %761 = vmatprep.subr.mxu0 0.0
        %762 = vmatpush1.xpose.msra.mxu0 0.0
        %763 = vmatprep.subr.mxu0 0.0
        %764 = vmatpush1.xpose.msra.mxu0 0.0
        %765 = vmatprep.subr.mxu0 0.0
        %766 = vmatpush1.xpose.msra.mxu0 0.0
        %767 = vmatprep.subr.mxu0 0.0
        %768 = vmatpush1.xpose.msra.mxu0 0.0
        %769 = vmatprep.subr.mxu0 0.0
        %770 = vmatpush1.xpose.msra.mxu0 0.0
        %771 = vmatprep.subr.mxu0 0.0
        %772 = vmatpush1.xpose.msra.mxu0 0.0
        %773 = vmatprep.subr.mxu0 0.0
        %774 = vmatpush1.xpose.msra.mxu0 0.0
        %775 = vmatprep.subr.mxu0 0.0
        %776 = vmatpush1.xpose.msra.mxu0 0.0
        %777 = vmatprep.subr.mxu0 0.0
        %778 = vmatpush1.xpose.msra.mxu0 0.0
        %779 = vmatprep.subr.mxu0 0.0
        %780 = vmatpush1.xpose.msra.mxu0 0.0
        %781 = vmatprep.subr.mxu0 0.0
        %782 = vmatpush1.xpose.msra.mxu0 0.0
        %783 = vmatprep.subr.mxu0 0.0
        %784 = vmatpush1.xpose.msra.mxu0 0.0
        %785 = vmatprep.subr.mxu0 0.0
        %786 = vmatpush1.xpose.msra.mxu0 0.0
        %787 = vmatprep.subr.mxu0 0.0
        %788 = vmatpush1.xpose.msra.mxu0 0.0
        %789 = vmatprep.subr.mxu0 0.0
        %790 = vmatpush1.xpose.msra.mxu0 0.0
        %791 = vmatprep.subr.mxu0 0.0
        %792 = vmatpush1.xpose.msra.mxu0 0.0
        %v793 = vand.u32 %v236, 4294901760
        %v794 = vsub.f32 %v236, %v793
        %v795 = vand.u32 %v794, 4294901760
        %796 = vmatprep.mubr.f32.mxu0 %v795
        %v797 = vand.u32 %v235, 4294901760
        %v798 = vsub.f32 %v235, %v797
        %v799 = vand.u32 %v798, 4294901760
        %800 = vmatmul.mubr.f32.gmra.mrb[0].mxu0 %v799
        %v801 = vpop.f32.mrb[0].mxu0
        %v802 = vadd.f32 %v718, %v801
        %v803 = vpop.f32.mrb[0].mxu0
        %804 = vdwg.mxu0
        %v805 = vand.u32 %v334, 4294901760
        %v806 = vsub.f32 %v334, %v805
        %v807 = vand.u32 %v806, 4294901760
        %808 = vmatprep.subr.mxu0 %v807
        %v809 = vand.u32 %v333, 4294901760
        %v810 = vsub.f32 %v333, %v809
        %v811 = vand.u32 %v810, 4294901760
        %812 = vmatpush1.xpose.msra.mxu0 %v811
        %v813 = vand.u32 %v425, 4294901760
        %v814 = vsub.f32 %v425, %v813
        %v815 = vand.u32 %v814, 4294901760
        %816 = vmatprep.subr.mxu0 %v815
        %v817 = vand.u32 %v424, 4294901760
        %v818 = vsub.f32 %v424, %v817
        %v819 = vand.u32 %v818, 4294901760
        %820 = vmatpush1.xpose.msra.mxu0 %v819
        %v821 = vand.u32 %v427, 4294901760
        %v822 = vsub.f32 %v427, %v821
        %v823 = vand.u32 %v822, 4294901760
        %824 = vmatprep.subr.mxu0 %v823
        %v825 = vand.u32 %v426, 4294901760
        %v826 = vsub.f32 %v426, %v825
        %v827 = vand.u32 %v826, 4294901760
        %828 = vmatpush1.xpose.msra.mxu0 %v827
        %v829 = vand.u32 %v430, 4294901760
        %v830 = vsub.f32 %v430, %v829
        %v831 = vand.u32 %v830, 4294901760
        %832 = vmatprep.subr.mxu0 %v831
        %v833 = vand.u32 %v429, 4294901760
        %v834 = vsub.f32 %v429, %v833
        %v835 = vand.u32 %v834, 4294901760
        %836 = vmatpush1.xpose.msra.mxu0 %v835
        %837 = vmatprep.subr.mxu0 0.0
        %838 = vmatpush1.xpose.msra.mxu0 0.0
        %839 = vmatprep.subr.mxu0 0.0
        %840 = vmatpush1.xpose.msra.mxu0 0.0
        %841 = vmatprep.subr.mxu0 0.0
        %842 = vmatpush1.xpose.msra.mxu0 0.0
        %843 = vmatprep.subr.mxu0 0.0
        %844 = vmatpush1.xpose.msra.mxu0 0.0
        %845 = vmatprep.subr.mxu0 0.0
        %846 = vmatpush1.xpose.msra.mxu0 0.0
        %847 = vmatprep.subr.mxu0 0.0
        %848 = vmatpush1.xpose.msra.mxu0 0.0
        %849 = vmatprep.subr.mxu0 0.0
        %850 = vmatpush1.xpose.msra.mxu0 0.0
        %851 = vmatprep.subr.mxu0 0.0
        %852 = vmatpush1.xpose.msra.mxu0 0.0
        %853 = vmatprep.subr.mxu0 0.0
        %854 = vmatpush1.xpose.msra.mxu0 0.0
        %855 = vmatprep.subr.mxu0 0.0
        %856 = vmatpush1.xpose.msra.mxu0 0.0
        %857 = vmatprep.subr.mxu0 0.0
        %858 = vmatpush1.xpose.msra.mxu0 0.0
        %859 = vmatprep.subr.mxu0 0.0
        %860 = vmatpush1.xpose.msra.mxu0 0.0
        %861 = vmatprep.subr.mxu0 0.0
        %862 = vmatpush1.xpose.msra.mxu0 0.0
        %863 = vmatprep.subr.mxu0 0.0
        %864 = vmatpush1.xpose.msra.mxu0 0.0
        %865 = vmatprep.subr.mxu0 0.0
        %866 = vmatpush1.xpose.msra.mxu0 0.0
        %867 = vmatprep.subr.mxu0 0.0
        %868 = vmatpush1.xpose.msra.mxu0 0.0
        %869 = vmatprep.subr.mxu0 0.0
        %870 = vmatpush1.xpose.msra.mxu0 0.0
        %871 = vmatprep.subr.mxu0 0.0
        %872 = vmatpush1.xpose.msra.mxu0 0.0
        %873 = vmatprep.subr.mxu0 0.0
        %874 = vmatpush1.xpose.msra.mxu0 0.0
        %875 = vmatprep.subr.mxu0 0.0
        %876 = vmatpush1.xpose.msra.mxu0 0.0
        %877 = vmatprep.subr.mxu0 0.0
        %878 = vmatpush1.xpose.msra.mxu0 0.0
        %879 = vmatprep.subr.mxu0 0.0
        %880 = vmatpush1.xpose.msra.mxu0 0.0
        %881 = vmatprep.subr.mxu0 0.0
        %882 = vmatpush1.xpose.msra.mxu0 0.0
        %883 = vmatprep.subr.mxu0 0.0
        %884 = vmatpush1.xpose.msra.mxu0 0.0
        %885 = vmatprep.subr.mxu0 0.0
        %886 = vmatpush1.xpose.msra.mxu0 0.0
        %887 = vmatprep.subr.mxu0 0.0
        %888 = vmatpush1.xpose.msra.mxu0 0.0
        %889 = vmatprep.subr.mxu0 0.0
        %890 = vmatpush1.xpose.msra.mxu0 0.0
        %891 = vmatprep.subr.mxu0 0.0
        %892 = vmatpush1.xpose.msra.mxu0 0.0
        %v893 = vand.u32 %v236, 4294901760
        %894 = vmatprep.mubr.f32.mxu0 %v893
        %v895 = vand.u32 %v235, 4294901760
        %896 = vmatmul.mubr.f32.gmra.mrb[0].mxu0 %v895
        %v897 = vpop.f32.mrb[0].mxu0
        %v898 = vadd.f32 %v802, %v897
        %v899 = vpop.f32.mrb[0].mxu0
        %900 = vdwg.mxu0
        %v901 = vand.u32 %v334, 4294901760
        %902 = vmatprep.subr.mxu0 %v901
        %v903 = vand.u32 %v333, 4294901760
        %904 = vmatpush1.xpose.msra.mxu0 %v903
        %v905 = vand.u32 %v425, 4294901760
        %906 = vmatprep.subr.mxu0 %v905
        %v907 = vand.u32 %v424, 4294901760
        %908 = vmatpush1.xpose.msra.mxu0 %v907
        %v909 = vand.u32 %v427, 4294901760
        %910 = vmatprep.subr.mxu0 %v909
        %v911 = vand.u32 %v426, 4294901760
        %912 = vmatpush1.xpose.msra.mxu0 %v911
        %v913 = vand.u32 %v430, 4294901760
        %914 = vmatprep.subr.mxu0 %v913
        %v915 = vand.u32 %v429, 4294901760
        %916 = vmatpush1.xpose.msra.mxu0 %v915
        %917 = vmatprep.subr.mxu0 0.0
        %918 = vmatpush1.xpose.msra.mxu0 0.0
        %919 = vmatprep.subr.mxu0 0.0
        %920 = vmatpush1.xpose.msra.mxu0 0.0
        %921 = vmatprep.subr.mxu0 0.0
        %922 = vmatpush1.xpose.msra.mxu0 0.0
        %923 = vmatprep.subr.mxu0 0.0
        %924 = vmatpush1.xpose.msra.mxu0 0.0
        %925 = vmatprep.subr.mxu0 0.0
        %926 = vmatpush1.xpose.msra.mxu0 0.0
        %927 = vmatprep.subr.mxu0 0.0
        %928 = vmatpush1.xpose.msra.mxu0 0.0
        %929 = vmatprep.subr.mxu0 0.0
        %930 = vmatpush1.xpose.msra.mxu0 0.0
        %931 = vmatprep.subr.mxu0 0.0
        %932 = vmatpush1.xpose.msra.mxu0 0.0
        %933 = vmatprep.subr.mxu0 0.0
        %934 = vmatpush1.xpose.msra.mxu0 0.0
        %935 = vmatprep.subr.mxu0 0.0
        %936 = vmatpush1.xpose.msra.mxu0 0.0
        %937 = vmatprep.subr.mxu0 0.0
        %938 = vmatpush1.xpose.msra.mxu0 0.0
        %939 = vmatprep.subr.mxu0 0.0
        %940 = vmatpush1.xpose.msra.mxu0 0.0
        %941 = vmatprep.subr.mxu0 0.0
        %942 = vmatpush1.xpose.msra.mxu0 0.0
        %943 = vmatprep.subr.mxu0 0.0
        %944 = vmatpush1.xpose.msra.mxu0 0.0
        %945 = vmatprep.subr.mxu0 0.0
        %946 = vmatpush1.xpose.msra.mxu0 0.0
        %947 = vmatprep.subr.mxu0 0.0
        %948 = vmatpush1.xpose.msra.mxu0 0.0
        %949 = vmatprep.subr.mxu0 0.0
        %950 = vmatpush1.xpose.msra.mxu0 0.0
        %951 = vmatprep.subr.mxu0 0.0
        %952 = vmatpush1.xpose.msra.mxu0 0.0
        %953 = vmatprep.subr.mxu0 0.0
        %954 = vmatpush1.xpose.msra.mxu0 0.0
        %955 = vmatprep.subr.mxu0 0.0
        %956 = vmatpush1.xpose.msra.mxu0 0.0
        %957 = vmatprep.subr.mxu0 0.0
        %958 = vmatpush1.xpose.msra.mxu0 0.0
        %959 = vmatprep.subr.mxu0 0.0
        %960 = vmatpush1.xpose.msra.mxu0 0.0
        %961 = vmatprep.subr.mxu0 0.0
        %962 = vmatpush1.xpose.msra.mxu0 0.0
        %963 = vmatprep.subr.mxu0 0.0
        %964 = vmatpush1.xpose.msra.mxu0 0.0
        %965 = vmatprep.subr.mxu0 0.0
        %966 = vmatpush1.xpose.msra.mxu0 0.0
        %967 = vmatprep.subr.mxu0 0.0
        %968 = vmatpush1.xpose.msra.mxu0 0.0
        %969 = vmatprep.subr.mxu0 0.0
        %970 = vmatpush1.xpose.msra.mxu0 0.0
        %971 = vmatprep.subr.mxu0 0.0
        %972 = vmatpush1.xpose.msra.mxu0 0.0
        %v973 = vand.u32 %v236, 4294901760
        %974 = vmatprep.mubr.f32.mxu0 %v973
        %v975 = vand.u32 %v235, 4294901760
        %976 = vmatmul.mubr.f32.gmra.mrb[0].mxu0 %v975
        %v977 = vpop.f32.mrb[0].mxu0
        %v978 = vadd.f32 %v898, %v977
        %v979 = vpop.f32.mrb[0].mxu0
        %980 = vdwg.mxu0
        %v981 = vld [vmem:[#allocation2] sm:$0xf]
        %v982 = vadd.f32 %v981, %v978
        %vm983 = vcmask 248832
        %984 = vst.msk [vmem:[#allocation2] sm:$0xf] %vm983, %v982
        // Predicated region
        $region41: #{tpu_custom_call.1} parent=27 // pred_check
          _
        $region42: #{tpu_custom_call.1} parent=27 // pred_check_branch
          %986 = sbr.rel (%p213) target = $region44
        $region43: #{tpu_custom_call.1} parent=27 // pred_region
          %v987 = vld [vmem:[#allocation2] sm:$0xf]
          %vm988 = vcmp.gt.f32.partialorder %v987, 0.0
          %v989 = vsel %vm988, 1, 0
          %v990 = vcvt.s32.f32 %v989
          %v991 = vsel %vm988, %v987, 1.0
          %993 = vrot.lane.b32.xlu0 %v991, 20
          %v994 = vpop.permute.xlu0 %993
          %v996 = vrcp.pop %v994
          %v997 = vmul.f32 %v987, %v996
          %998 = vrot.lane.b32.xlu0 %v991, 10
          %v999 = vpop.permute.xlu0 %998
          %v1001 = vrcp.pop %v999
          %v1002 = vmul.f32 %v987, %v1001
          %1004 = vrot.lane.b32.xlu0 %v1002, 10
          %v1005 = vpop.permute.xlu0 %1004
          %v1007 = vsub.f32 %v997, %v1005
          %v1008 = vand.u32 2147483647, %v1007
          %1010 = vrot.lane.b32.xlu0 %v1008, 108
          %v1011 = vpop.permute.xlu0 %1010
          %v1013 = vmul.f32 %v987, %v1011
          %vm1014 = vcmask 76800
          %v1015 = vsel %vm1014, %v1013, 0.0
          %1016 = vadd.xlane.f32.xlu0 %v1015
          %v1017 = vpop.xlane.xlu0 %1016
          %v1018 = vmax.f32 %v987, 1.0
          %v1019 = vrcp.pop %v1018
          %v1020 = vmul.f32 %v1017, %v1019
          %vm1021 = vcmp.ne.s32.totalorder %v222, 0
          %v1022 = vsel %vm1021, 1, 0
          %v1023 = vcvt.s32.f32 %v1022
          %v1024 = vmul.f32 %v1023, %v990
          %v1025 = vmul.f32 %v1024, %v1020
          %1027 = vrot.lane.b32.xlu0 %v1025, 98
          %v1028 = vpop.permute.xlu0 %1027
          %vm1030 = vcmask 3072
          %v1031 = vsel %vm1030, %v1028, 0.0
          %1032 = vadd.xlane.f32.xlu0 %v1031
          %v1033 = vpop.xlane.xlu0 %1032
          %v1034 = vrot.slane %v1033, 4
          %v1035 = vadd.f32 %v1033, %v1034
          %v1036 = vrot.slane %v1035, 2
          %v1037 = vadd.f32 %v1035, %v1036
          %v1038 = vrot.slane %v1037, 1
          %v1039 = vadd.f32 %v1037, %v1038
          %s1040 = vtos %v1039
          %1042 = vrot.lane.b32.xlu0 %v990, 98
          %v1043 = vpop.permute.xlu0 %1042
          %v1045 = vsel %vm1030, %v1043, 0.0
          %1046 = vadd.xlane.f32.xlu0 %v1045
          %v1047 = vpop.xlane.xlu0 %1046
          %v1048 = vrot.slane %v1047, 4
          %v1049 = vadd.f32 %v1047, %v1048
          %v1050 = vrot.slane %v1049, 2
          %v1051 = vadd.f32 %v1049, %v1050
          %v1052 = vrot.slane %v1051, 1
          %v1053 = vadd.f32 %v1051, %v1052
          %s1054 = vtos %v1053
          %s1055 = smax.f32 %s1054, 1.0
          %v1056 = vstv %s1055
          %v1057 = vrcp.pop %v1056
          %s1058 = vtos %v1057
          %s1059 = smul.f32 %s1040, %s1058
          %s1060 = scalar_lea.smem [#allocation8], 0
          %1061 = sst [smem:[%s1060]] %s1059
        $region44: #{tpu_custom_call.1} parent=27 // pred_fallthru
          _
        // Predicated region
        $region45: #{tpu_custom_call.1} parent=27 // pred_check
          %p1062 = pneg %p101
        $region46: #{tpu_custom_call.1} parent=27 // pred_check_branch
          %1064 = sbr.rel (%p1062) target = $region48
        $region47: #{tpu_custom_call.1} parent=27 // pred_region
          %s1066 = ssub.s32 16, 16
          %1067 = vsyncadd [#allocation5], %s1066
          %1070 = dma.smem_to_hbm [#allocation8], 16, %s2, [#allocation5]
        $region48: #{tpu_custom_call.1} parent=27 // pred_fallthru
          _
        // Predicated region
        $region49: #{tpu_custom_call.1} parent=27 // pred_check
          %p1071 = pneg %p101
        $region50: #{tpu_custom_call.1} parent=27 // pred_check_branch
          %1073 = sbr.rel (%p1071) target = $region52
        $region51: #{tpu_custom_call.1} parent=27 // pred_region
          %1074 = dma.done [#allocation5], 16
        $region52: #{tpu_custom_call.1} parent=27 // pred_fallthru
          _
        %1075 = sfence
      $region28: #{tpu_custom_call.1} parent=5 // pred_fallthru
        _
      %p1076 = scmp.le.s32.totalorder 2, %s15
      // Predicated region
      $region53: #{tpu_custom_call.1} parent=5 // pred_check
        %p1077 = pneg %p1076
      $region54: #{tpu_custom_call.1} parent=5 // pred_check_branch
        %1079 = sbr.rel (%p1077) target = $region56
      $region55: #{tpu_custom_call.1} parent=5 // pred_region
        %s1080 = ssub.s32 %s15, 2
      $region56: #{tpu_custom_call.1} parent=5 // pred_fallthru
        _
    $region6: #{tpu_custom_call.1} parent=1 // loop_footer
      %s19 = sadd.s32 1, %s15
    $region7: #{tpu_custom_call.1} parent=1 // loop_footer_branch
      %14 = sbr.rel target = $region3
    $region8: #{tpu_custom_call.1} parent=1 // loop_exit
      _
    %1081 = vsyncpa [#allocation4], 1
    %s1082 = scalar_lea.sflag [#allocation4], 1
    %1083 = vsyncpa %s1082, 1
    %1084 = vsyncpa [#allocation7], 1
    %s1085 = scalar_lea.sflag [#allocation7], 1
    %1086 = vsyncpa %s1085, 1
    %1087 = vsyncpa [#allocation5], 1
    %s1088 = scalar_lea.sflag [#allocation5], 1
    %1089 = vsyncpa %s1088, 1

</llo_original>
